<compile_context>
chip_gen: v7x
topology: tpu7x:2x2x1
jax: 0.10.0
libtpu: 0.0.40
codegen_flags: <defaults>
</compile_context>

<pallas_src>
import jax
import jax.numpy as jnp
from jax.experimental import pallas as pl
from jax.experimental.pallas import tpu as pltpu


def _round_up(x, m):
    return ((x + m - 1) // m) * m


# --------------------------------- kernels ---------------------------------


def _temp_scale_kernel_resident(t_ref, x_ref, w_ref, b_ref, o_ref):
    """Full reduction dim in one block: no scratch, no init/finalize phases."""
    acc = jnp.dot(x_ref[...], w_ref[...], preferred_element_type=jnp.float32)
    inv_t = 1.0 / t_ref[0]                      # scalar reciprocal (exact)
    o_ref[...] = ((acc + b_ref[...]) * inv_t).astype(o_ref.dtype)


def _temp_scale_kernel_tiled_k(t_ref, x_ref, w_ref, b_ref, o_ref, acc_ref):
    """Large-D fallback: K tiled on grid axis 2 with an f32 VMEM accumulator."""
    k = pl.program_id(2)
    partial = jnp.dot(x_ref[...], w_ref[...], preferred_element_type=jnp.float32)

    @pl.when(k == 0)
    def _():
        acc_ref[...] = partial                  # first partial written directly

    @pl.when(k != 0)
    def _():
        acc_ref[...] += partial

    @pl.when(k == pl.num_programs(2) - 1)
    def _():
        inv_t = 1.0 / t_ref[0]
        o_ref[...] = ((acc_ref[...] + b_ref[...]) * inv_t).astype(o_ref.dtype)


# --------------------------------- wrapper ---------------------------------

_TILE_BUDGET_BYTES = 48 * 1024 * 1024       # leaves headroom on v7x (64 MiB VMEM)
_VMEM_LIMIT_BYTES = 64 * 1024 * 1024


def make_model_with_temperature(w, b):
    """Pre-pads classifier params once; returns jitted forward(x, temperature)."""
    D, N = w.shape

    Np = _round_up(N, 128)
    # Class tile: multiple of 128 (lane-dense output stores, full MXU columns).
    tn = 256 if (Np % 256 == 0) else 128
    # K tile for the large-D fallback (multiple of 128, capped at 4096).
    tk = min(4096, _round_up(D, 128))
    Dp = _round_up(D, tk)

    # One-time padding of weight / bias (hoisted out of the per-call path).
    w_p = jnp.pad(w.astype(jnp.float32), ((0, Dp - D), (0, Np - N)))
    b_p = jnp.pad(b.astype(jnp.float32), (0, Np - N)).reshape(1, Np)
    # TODO(synk): for a further ~2x on HBM-bound shapes, store w_p / x in bf16
    # (keep preferred_element_type=f32) and relax the reference tol to ~1e-2.

    def forward(x_nchw, temperature):
        B = x_nchw.shape[0]
        x_flat = x_nchw.reshape(B, -1).astype(jnp.float32)

        Bp = _round_up(max(B, 8), 8)
        tm = min(Bp, 128)        # v5e-friendly; raise to 256 on v6e+ for huge batches
        Bp = _round_up(Bp, tm)

        x_p = jnp.pad(x_flat, ((0, Bp - B), (0, Dp - D)))
        t = temperature.astype(jnp.float32).reshape(1)

        # VMEM needed to keep the whole (Dp, tn) W panel resident:
        # double-buffered x / W / b input blocks + double-buffered output block.
        resident_bytes = 4 * (2 * (tm * Dp + Dp * tn + tn) + 2 * tm * tn)

        if resident_bytes <= _TILE_BUDGET_BYTES:
            # Single K step: no accumulator scratch, no pl.when phases; the W
            # panel's block index ignores the batch axis -> stays VMEM-resident.
            grid = (Np // tn, Bp // tm)            # (class tiles, batch tiles)
            out = pl.pallas_call(
                _temp_scale_kernel_resident,
                out_shape=jax.ShapeDtypeStruct((Bp, Np), jnp.float32),
                grid=grid,
                in_specs=[
                    pl.BlockSpec(memory_space=pltpu.MemorySpace.SMEM),  # temperature
                    pl.BlockSpec((tm, Dp), lambda j, i: (i, 0)),
                    pl.BlockSpec((Dp, tn), lambda j, i: (0, j)),
                    pl.BlockSpec((1, tn), lambda j, i: (0, j)),
                ],
                out_specs=pl.BlockSpec((tm, tn), lambda j, i: (i, j)),
                compiler_params=pltpu.CompilerParams(
                    dimension_semantics=("parallel", "parallel"),
                    vmem_limit_bytes=_VMEM_LIMIT_BYTES,
                ),
            )(t, x_p, w_p, b_p)
        else:
            # Large-D fallback: K tiled with an f32 accumulator, W triple-buffered.
            grid = (Np // tn, Bp // tm, Dp // tk)  # (class, batch, K)
            out = pl.pallas_call(
                _temp_scale_kernel_tiled_k,
                out_shape=jax.ShapeDtypeStruct((Bp, Np), jnp.float32),
                grid=grid,
                in_specs=[
                    pl.BlockSpec(memory_space=pltpu.MemorySpace.SMEM),  # temperature
                    pl.BlockSpec((tm, tk), lambda j, i, k: (i, k)),
                    pl.BlockSpec((tk, tn), lambda j, i, k: (k, j),
                                 pipeline_mode=pl.Buffered(3)),
                    pl.BlockSpec((1, tn), lambda j, i, k: (0, j)),
                ],
                out_specs=pl.BlockSpec((tm, tn), lambda j, i, k: (i, j)),
                scratch_shapes=[pltpu.VMEM((tm, tn), jnp.float32)],
                compiler_params=pltpu.CompilerParams(
                    dimension_semantics=("parallel", "parallel", "arbitrary"),
                    vmem_limit_bytes=_VMEM_LIMIT_BYTES,
                ),
            )(t, x_p, w_p, b_p)

        # Slice padding back off.
        return out[:B, :N]

    return jax.jit(forward)


if __name__ == "__main__":
    # Small shapes consistent with an image classifier wrapped by
    # ModelWithTemperature: batch=2, channels=4, spatial=16x16, 10 classes.
    B, C, H, W = 2, 4, 16, 16
    NUM_CLASSES = 10
    D = C * H * W

    key = jax.random.PRNGKey(0)
    kx, kw, kb = jax.random.split(key, 3)

    x = jax.random.normal(kx, (B, C, H, W), dtype=jnp.float32)
    w = jax.random.normal(kw, (D, NUM_CLASSES), dtype=jnp.float32) * 0.02
    b = jax.random.normal(kb, (NUM_CLASSES,), dtype=jnp.float32) * 0.01
    # nn.Parameter(torch.ones(1) * 1.5)
    temperature = jnp.ones((1,), dtype=jnp.float32) * 1.5

    forward = make_model_with_temperature(w, b)   # params padded once, jitted
    out = jax.block_until_ready(forward(x, temperature))

    # Pure-JAX reference check (same semantics as the PyTorch forward).
    ref_logits = x.reshape(B, -1) @ w + b
    ref = ref_logits / temperature[0]
    assert out.shape == (B, NUM_CLASSES)
    assert jnp.allclose(out, ref, rtol=1e-5, atol=1e-5), "mismatch vs reference"

    print("KERNEL_OK")
</pallas_src>

<mosaic_0001>
module attributes {stable_mosaic.version = 11 : i64} {
  func.func @_temp_scale_kernel_resident(%arg0: i32, %arg1: i32, %arg2: memref<1xf32, #tpu.memory_space<smem>>, %arg3: memref<8x1024xf32, #tpu.memory_space<vmem>>, %arg4: memref<1024x128xf32, #tpu.memory_space<vmem>>, %arg5: memref<1x128xf32, #tpu.memory_space<vmem>>, %arg6: memref<8x128xf32, #tpu.memory_space<vmem>>) attributes {dimension_semantics = [#tpu.dimension_semantics<parallel>, #tpu.dimension_semantics<parallel>], iteration_bounds = array<i64: 1, 1>, scalar_prefetch = 0 : i64, scratch_operands = 0 : i64, tpu.core_type = #tpu.core_type<tc>, window_params = [{transform_indices = @transform_0, window_bounds = array<i64: 1>}, {transform_indices = @transform_1, window_bounds = array<i64: 8, 1024>}, {transform_indices = @transform_2, window_bounds = array<i64: 1024, 128>}, {transform_indices = @transform_3, window_bounds = array<i64: 1, 128>}, {transform_indices = @transform_4, window_bounds = array<i64: 8, 128>}]} {
    %c0 = arith.constant 0 : index
    %c0_0 = arith.constant 0 : index
    %0 = vector.load %arg3[%c0, %c0_0] : memref<8x1024xf32, #tpu.memory_space<vmem>>, vector<8x1024xf32>
    %c0_1 = arith.constant 0 : index
    %c0_2 = arith.constant 0 : index
    %1 = vector.load %arg4[%c0_1, %c0_2] : memref<1024x128xf32, #tpu.memory_space<vmem>>, vector<1024x128xf32>
    %cst = arith.constant dense<0.000000e+00> : vector<8x128xf32>
    %2 = tpu.matmul %0, %1, %cst {dimension_numbers = #tpu.dot_dimension_numbers<[1], [0], [0], [1], [0, 0, 1, 1], [], []>} : vector<8x1024xf32>, vector<1024x128xf32>, vector<8x128xf32> -> vector<8x128xf32>
    %c0_3 = arith.constant 0 : index
    %3 = memref.load %arg2[%c0_3] : memref<1xf32, #tpu.memory_space<smem>>
    %cst_4 = arith.constant 1.000000e+00 : f32
    %4 = arith.divf %cst_4, %3 : f32
    %c0_5 = arith.constant 0 : index
    %c0_6 = arith.constant 0 : index
    %5 = vector.load %arg5[%c0_5, %c0_6] : memref<1x128xf32, #tpu.memory_space<vmem>>, vector<1x128xf32>
    %6 = vector.broadcast %5 : vector<1x128xf32> to vector<8x128xf32>
    %7 = arith.addf %2, %6 : vector<8x128xf32>
    %8 = vector.broadcast %4 : f32 to vector<8x128xf32>
    %9 = arith.mulf %7, %8 : vector<8x128xf32>
    %c0_7 = arith.constant 0 : index
    %c0_8 = arith.constant 0 : index
    %10 = vector.load %arg6[%c0_7, %c0_8] : memref<8x128xf32, #tpu.memory_space<vmem>>, vector<8x128xf32>
    tpu.vector_store %arg6[%c0_7, %c0_8], %9 {strides = array<i32>} : memref<8x128xf32, #tpu.memory_space<vmem>>, vector<8x128xf32>,
    return
  }
  func.func @transform_0(%arg0: i32, %arg1: i32) -> i32 {
    %c0_i32 = arith.constant 0 : i32
    %c0_i32_0 = arith.constant 0 : i32
    return %c0_i32 : i32
  }
  func.func @transform_1(%arg0: i32, %arg1: i32) -> (i32, i32) {
    %c0_i32 = arith.constant 0 : i32
    %c0_i32_0 = arith.constant 0 : i32
    return %arg1, %c0_i32 : i32, i32
  }
  func.func @transform_2(%arg0: i32, %arg1: i32) -> (i32, i32) {
    %c0_i32 = arith.constant 0 : i32
    %c0_i32_0 = arith.constant 0 : i32
    return %c0_i32, %arg0 : i32, i32
  }
  func.func @transform_3(%arg0: i32, %arg1: i32) -> (i32, i32) {
    %c0_i32 = arith.constant 0 : i32
    %c0_i32_0 = arith.constant 0 : i32
    return %c0_i32, %arg0 : i32, i32
  }
  func.func @transform_4(%arg0: i32, %arg1: i32) -> (i32, i32) {
    %c0_i32 = arith.constant 0 : i32
    return %arg1, %arg0 : i32, i32
  }
}

</mosaic_0001>

<llo_original>
// kernel: forward.1
$region0: #{forward.1}
  #allocation0 [shape = 'u32[]', space=smem, size = 0x4, offset = 0x4, fixed_abs, tag = 'smem constant byte address 0x4 - core index']
  #allocation1 [shape = 'u32[144,128]{1,0:T(1,128)}', space=vmem, size = 0x12000, scoped, tag = 'internal scratch']
  #allocation2 [shape = 'f32[1]{0:T(128)S(6)}', space=smem, size = 0x200, scoped, tag = 'scoped memory for forward.1']
  %s0 = inlined_call_operand.<no memory space> [shape: f32[1], index: 0, kind: input, shape index: {}]
  %s1 = inlined_call_operand.hbm [shape: f32[8,1024], index: 1, kind: input, shape index: {}]
  %s2 = inlined_call_operand.hbm [shape: f32[1024,128], index: 2, kind: input, shape index: {}]
  %s3 = inlined_call_operand.hbm [shape: f32[1,128], index: 3, kind: input, shape index: {}]
  %s4 = inlined_call_operand.hbm [shape: f32[8,128], index: 4, kind: output, shape index: {}]
  %s5 = sld [smem:[#allocation0]]
  $region38: #{forward.1} parent=0
    _
  %s7 = ssub.s32 1, %s5
  %s8 = scalar_select 0, %s7, %s5
  %9 = sst [smem:[#allocation2]] %s0
  $region1: #{forward.1} parent=0
    #allocation3 [shape = 'u8[32768]{0}', space=vmem, size = 0x8000, scoped, tag = 'input window, operand 1, single buffered']
    #allocation4 [shape = 's32[1]{0}', space=sflag, size = 0x4, scoped, tag = 'scoped memory for forward.1']
    #allocation5 [shape = 's32[1]{0}', space=sflag, size = 0x4, scoped, tag = 'scoped memory for forward.1']
    #allocation6 [shape = 'u8[524288]{0}', space=vmem, size = 0x80000, scoped, tag = 'input window, operand 2, single buffered']
    #allocation7 [shape = 's32[1]{0}', space=sflag, size = 0x4, scoped, tag = 'scoped memory for forward.1']
    #allocation8 [shape = 'u8[512]{0}', space=vmem, size = 0x400, scoped, tag = 'input window, operand 3, single buffered']
    #allocation9 [shape = 'u8[4096]{0}', space=vmem, size = 0x1000, scoped, tag = 'output window, operand 0, single buffered']
    %10 = vsyncpa [#allocation4], 0
    %11 = vsyncpa [#allocation7], 0
    %12 = vsyncpa [#allocation5], 0
    // Predicated region
    $region2: #{forward.1} parent=1 // pred_check
      _
    $region3: #{forward.1} parent=1 // pred_check_branch
      %14 = sbr.rel (0) target = $region5
    $region4: #{forward.1} parent=1 // pred_region
      _
    $region5: #{forward.1} parent=1 // pred_fallthru
      _
    // Predicated region
    $region6: #{forward.1} parent=1 // pred_check
      _
    $region7: #{forward.1} parent=1 // pred_check_branch
      %16 = sbr.rel (0) target = $region9
    $region8: #{forward.1} parent=1 // pred_region
      %s18 = ssub.s32 1024, 1024
      %19 = vsyncadd [#allocation4], %s18
      %s21 = sshll.u32 [#allocation3], 4
      %s22 = int_to_ptr.vmem [resolvable:$true] %s21
      %24 = dma.hbm_to_vmem [thread:$0]  %s1, 1024, %s22, [#allocation4]
    $region9: #{forward.1} parent=1 // pred_fallthru
      _
    // Predicated region
    $region10: #{forward.1} parent=1 // pred_check
      _
    $region11: #{forward.1} parent=1 // pred_check_branch
      %26 = sbr.rel (0) target = $region13
    $region12: #{forward.1} parent=1 // pred_region
      %s28 = ssub.s32 16384, 16384
      %29 = vsyncadd [#allocation7], %s28
      %s30 = sshll.u32 [#allocation6], 4
      %s31 = int_to_ptr.vmem [resolvable:$true] %s30
      %36 = dma.hbm_to_vmem [thread:$0]  %s2, 16384, %s31, [#allocation7], 128, 128, 8
    $region13: #{forward.1} parent=1 // pred_fallthru
      _
    // Predicated region
    $region14: #{forward.1} parent=1 // pred_check
      _
    $region15: #{forward.1} parent=1 // pred_check_branch
      %38 = sbr.rel (0) target = $region17
    $region16: #{forward.1} parent=1 // pred_region
      %s40 = ssub.s32 16, 16
      %41 = vsyncadd [#allocation7], %s40
      %s43 = sshll.u32 [#allocation8], 4
      %s44 = int_to_ptr.vmem [resolvable:$true] %s43
      %46 = dma.hbm_to_vmem [thread:$0]  %s3, 16, %s44, [#allocation7]
    $region17: #{forward.1} parent=1 // pred_fallthru
      _
    // Predicated region
    $region18: #{forward.1} parent=1 // pred_check
      _
    $region19: #{forward.1} parent=1 // pred_check_branch
      %48 = sbr.rel (0) target = $region21
    $region20: #{forward.1} parent=1 // pred_region
      %49 = dma.done [#allocation4], 1024
    $region21: #{forward.1} parent=1 // pred_fallthru
      _
    // Predicated region
    $region22: #{forward.1} parent=1 // pred_check
      _
    $region23: #{forward.1} parent=1 // pred_check_branch
      %51 = sbr.rel (0) target = $region25
    $region24: #{forward.1} parent=1 // pred_region
      %52 = dma.done [#allocation7], 16384
    $region25: #{forward.1} parent=1 // pred_fallthru
      _
    // Predicated region
    $region26: #{forward.1} parent=1 // pred_check
      _
    $region27: #{forward.1} parent=1 // pred_check_branch
      %54 = sbr.rel (0) target = $region29
    $region28: #{forward.1} parent=1 // pred_region
      %55 = dma.done [#allocation7], 16
    $region29: #{forward.1} parent=1 // pred_fallthru
      _
    %v56 = vld [vmem:[#allocation3] sm:$0xff]
    %v57 = vld [vmem:[#allocation3 + $0x8] sm:$0xff]
    %v58 = vld [vmem:[#allocation3 + $0x10] sm:$0xff]
    %v59 = vld [vmem:[#allocation3 + $0x18] sm:$0xff]
    %v60 = vld [vmem:[#allocation3 + $0x20] sm:$0xff]
    %v61 = vld [vmem:[#allocation3 + $0x28] sm:$0xff]
    %v62 = vld [vmem:[#allocation3 + $0x30] sm:$0xff]
    %v63 = vld [vmem:[#allocation3 + $0x38] sm:$0xff]
    %v64 = vld [vmem:[#allocation6] sm:$0xff]
    %v65 = vld [vmem:[#allocation6 + $0x8] sm:$0xff]
    %v66 = vld [vmem:[#allocation6 + $0x10] sm:$0xff]
    %v67 = vld [vmem:[#allocation6 + $0x18] sm:$0xff]
    %v68 = vld [vmem:[#allocation6 + $0x20] sm:$0xff]
    %v69 = vld [vmem:[#allocation6 + $0x28] sm:$0xff]
    %v70 = vld [vmem:[#allocation6 + $0x30] sm:$0xff]
    %v71 = vld [vmem:[#allocation6 + $0x38] sm:$0xff]
    %v72 = vld [vmem:[#allocation6 + $0x40] sm:$0xff]
    %v73 = vld [vmem:[#allocation6 + $0x48] sm:$0xff]
    %v74 = vld [vmem:[#allocation6 + $0x50] sm:$0xff]
    %v75 = vld [vmem:[#allocation6 + $0x58] sm:$0xff]
    %v76 = vld [vmem:[#allocation6 + $0x60] sm:$0xff]
    %v77 = vld [vmem:[#allocation6 + $0x68] sm:$0xff]
    %v78 = vld [vmem:[#allocation6 + $0x70] sm:$0xff]
    %v79 = vld [vmem:[#allocation6 + $0x78] sm:$0xff]
    %v80 = vld [vmem:[#allocation6 + $0x80] sm:$0xff]
    %v81 = vld [vmem:[#allocation6 + $0x88] sm:$0xff]
    %v82 = vld [vmem:[#allocation6 + $0x90] sm:$0xff]
    %v83 = vld [vmem:[#allocation6 + $0x98] sm:$0xff]
    %v84 = vld [vmem:[#allocation6 + $0xa0] sm:$0xff]
    %v85 = vld [vmem:[#allocation6 + $0xa8] sm:$0xff]
    %v86 = vld [vmem:[#allocation6 + $0xb0] sm:$0xff]
    %v87 = vld [vmem:[#allocation6 + $0xb8] sm:$0xff]
    %v88 = vld [vmem:[#allocation6 + $0xc0] sm:$0xff]
    %v89 = vld [vmem:[#allocation6 + $0xc8] sm:$0xff]
    %v90 = vld [vmem:[#allocation6 + $0xd0] sm:$0xff]
    %v91 = vld [vmem:[#allocation6 + $0xd8] sm:$0xff]
    %v92 = vld [vmem:[#allocation6 + $0xe0] sm:$0xff]
    %v93 = vld [vmem:[#allocation6 + $0xe8] sm:$0xff]
    %v94 = vld [vmem:[#allocation6 + $0xf0] sm:$0xff]
    %v95 = vld [vmem:[#allocation6 + $0xf8] sm:$0xff]
    %v96 = vld [vmem:[#allocation6 + $0x100] sm:$0xff]
    %v97 = vld [vmem:[#allocation6 + $0x108] sm:$0xff]
    %v98 = vld [vmem:[#allocation6 + $0x110] sm:$0xff]
    %v99 = vld [vmem:[#allocation6 + $0x118] sm:$0xff]
    %v100 = vld [vmem:[#allocation6 + $0x120] sm:$0xff]
    %v101 = vld [vmem:[#allocation6 + $0x128] sm:$0xff]
    %v102 = vld [vmem:[#allocation6 + $0x130] sm:$0xff]
    %v103 = vld [vmem:[#allocation6 + $0x138] sm:$0xff]
    %v104 = vld [vmem:[#allocation6 + $0x140] sm:$0xff]
    %v105 = vld [vmem:[#allocation6 + $0x148] sm:$0xff]
    %v106 = vld [vmem:[#allocation6 + $0x150] sm:$0xff]
    %v107 = vld [vmem:[#allocation6 + $0x158] sm:$0xff]
    %v108 = vld [vmem:[#allocation6 + $0x160] sm:$0xff]
    %v109 = vld [vmem:[#allocation6 + $0x168] sm:$0xff]
    %v110 = vld [vmem:[#allocation6 + $0x170] sm:$0xff]
    %v111 = vld [vmem:[#allocation6 + $0x178] sm:$0xff]
    %v112 = vld [vmem:[#allocation6 + $0x180] sm:$0xff]
    %v113 = vld [vmem:[#allocation6 + $0x188] sm:$0xff]
    %v114 = vld [vmem:[#allocation6 + $0x190] sm:$0xff]
    %v115 = vld [vmem:[#allocation6 + $0x198] sm:$0xff]
    %v116 = vld [vmem:[#allocation6 + $0x1a0] sm:$0xff]
    %v117 = vld [vmem:[#allocation6 + $0x1a8] sm:$0xff]
    %v118 = vld [vmem:[#allocation6 + $0x1b0] sm:$0xff]
    %v119 = vld [vmem:[#allocation6 + $0x1b8] sm:$0xff]
    %v120 = vld [vmem:[#allocation6 + $0x1c0] sm:$0xff]
    %v121 = vld [vmem:[#allocation6 + $0x1c8] sm:$0xff]
    %v122 = vld [vmem:[#allocation6 + $0x1d0] sm:$0xff]
    %v123 = vld [vmem:[#allocation6 + $0x1d8] sm:$0xff]
    %v124 = vld [vmem:[#allocation6 + $0x1e0] sm:$0xff]
    %v125 = vld [vmem:[#allocation6 + $0x1e8] sm:$0xff]
    %v126 = vld [vmem:[#allocation6 + $0x1f0] sm:$0xff]
    %v127 = vld [vmem:[#allocation6 + $0x1f8] sm:$0xff]
    %v128 = vld [vmem:[#allocation6 + $0x200] sm:$0xff]
    %v129 = vld [vmem:[#allocation6 + $0x208] sm:$0xff]
    %v130 = vld [vmem:[#allocation6 + $0x210] sm:$0xff]
    %v131 = vld [vmem:[#allocation6 + $0x218] sm:$0xff]
    %v132 = vld [vmem:[#allocation6 + $0x220] sm:$0xff]
    %v133 = vld [vmem:[#allocation6 + $0x228] sm:$0xff]
    %v134 = vld [vmem:[#allocation6 + $0x230] sm:$0xff]
    %v135 = vld [vmem:[#allocation6 + $0x238] sm:$0xff]
    %v136 = vld [vmem:[#allocation6 + $0x240] sm:$0xff]
    %v137 = vld [vmem:[#allocation6 + $0x248] sm:$0xff]
    %v138 = vld [vmem:[#allocation6 + $0x250] sm:$0xff]
    %v139 = vld [vmem:[#allocation6 + $0x258] sm:$0xff]
    %v140 = vld [vmem:[#allocation6 + $0x260] sm:$0xff]
    %v141 = vld [vmem:[#allocation6 + $0x268] sm:$0xff]
    %v142 = vld [vmem:[#allocation6 + $0x270] sm:$0xff]
    %v143 = vld [vmem:[#allocation6 + $0x278] sm:$0xff]
    %v144 = vld [vmem:[#allocation6 + $0x280] sm:$0xff]
    %v145 = vld [vmem:[#allocation6 + $0x288] sm:$0xff]
    %v146 = vld [vmem:[#allocation6 + $0x290] sm:$0xff]
    %v147 = vld [vmem:[#allocation6 + $0x298] sm:$0xff]
    %v148 = vld [vmem:[#allocation6 + $0x2a0] sm:$0xff]
    %v149 = vld [vmem:[#allocation6 + $0x2a8] sm:$0xff]
    %v150 = vld [vmem:[#allocation6 + $0x2b0] sm:$0xff]
    %v151 = vld [vmem:[#allocation6 + $0x2b8] sm:$0xff]
    %v152 = vld [vmem:[#allocation6 + $0x2c0] sm:$0xff]
    %v153 = vld [vmem:[#allocation6 + $0x2c8] sm:$0xff]
    %v154 = vld [vmem:[#allocation6 + $0x2d0] sm:$0xff]
    %v155 = vld [vmem:[#allocation6 + $0x2d8] sm:$0xff]
    %v156 = vld [vmem:[#allocation6 + $0x2e0] sm:$0xff]
    %v157 = vld [vmem:[#allocation6 + $0x2e8] sm:$0xff]
    %v158 = vld [vmem:[#allocation6 + $0x2f0] sm:$0xff]
    %v159 = vld [vmem:[#allocation6 + $0x2f8] sm:$0xff]
    %v160 = vld [vmem:[#allocation6 + $0x300] sm:$0xff]
    %v161 = vld [vmem:[#allocation6 + $0x308] sm:$0xff]
    %v162 = vld [vmem:[#allocation6 + $0x310] sm:$0xff]
    %v163 = vld [vmem:[#allocation6 + $0x318] sm:$0xff]
    %v164 = vld [vmem:[#allocation6 + $0x320] sm:$0xff]
    %v165 = vld [vmem:[#allocation6 + $0x328] sm:$0xff]
    %v166 = vld [vmem:[#allocation6 + $0x330] sm:$0xff]
    %v167 = vld [vmem:[#allocation6 + $0x338] sm:$0xff]
    %v168 = vld [vmem:[#allocation6 + $0x340] sm:$0xff]
    %v169 = vld [vmem:[#allocation6 + $0x348] sm:$0xff]
    %v170 = vld [vmem:[#allocation6 + $0x350] sm:$0xff]
    %v171 = vld [vmem:[#allocation6 + $0x358] sm:$0xff]
    %v172 = vld [vmem:[#allocation6 + $0x360] sm:$0xff]
    %v173 = vld [vmem:[#allocation6 + $0x368] sm:$0xff]
    %v174 = vld [vmem:[#allocation6 + $0x370] sm:$0xff]
    %v175 = vld [vmem:[#allocation6 + $0x378] sm:$0xff]
    %v176 = vld [vmem:[#allocation6 + $0x380] sm:$0xff]
    %v177 = vld [vmem:[#allocation6 + $0x388] sm:$0xff]
    %v178 = vld [vmem:[#allocation6 + $0x390] sm:$0xff]
    %v179 = vld [vmem:[#allocation6 + $0x398] sm:$0xff]
    %v180 = vld [vmem:[#allocation6 + $0x3a0] sm:$0xff]
    %v181 = vld [vmem:[#allocation6 + $0x3a8] sm:$0xff]
    %v182 = vld [vmem:[#allocation6 + $0x3b0] sm:$0xff]
    %v183 = vld [vmem:[#allocation6 + $0x3b8] sm:$0xff]
    %v184 = vld [vmem:[#allocation6 + $0x3c0] sm:$0xff]
    %v185 = vld [vmem:[#allocation6 + $0x3c8] sm:$0xff]
    %v186 = vld [vmem:[#allocation6 + $0x3d0] sm:$0xff]
    %v187 = vld [vmem:[#allocation6 + $0x3d8] sm:$0xff]
    %v188 = vld [vmem:[#allocation6 + $0x3e0] sm:$0xff]
    %v189 = vld [vmem:[#allocation6 + $0x3e8] sm:$0xff]
    %v190 = vld [vmem:[#allocation6 + $0x3f0] sm:$0xff]
    %v191 = vld [vmem:[#allocation6 + $0x3f8] sm:$0xff]
    %s192 = sld [smem:[#allocation2]]
    %v193 = vstv %s192
    %v194 = vrcp.pop %v193
    %s195 = vtos %v194
    %v196 = vld [vmem:[#allocation8] sm:$0x1]
    %v198 = vlaneseq
    %v199 = vshrl.u32 %v198, 7
    %v200 = vsub.s32 0, %v199
    %v201 = vrot.slane %v196, %v200
    %203 = vmatprep.subr.mxu0 0.0
    %204 = vmatpush1.msra.mxu0 %v64
    %205 = vmatprep.subr.mxu0 0.0
    %206 = vmatpush1.msra.mxu0 %v65
    %207 = vmatprep.subr.mxu0 0.0
    %208 = vmatpush1.msra.mxu0 %v66
    %209 = vmatprep.subr.mxu0 0.0
    %210 = vmatpush1.msra.mxu0 %v67
    %211 = vmatprep.subr.mxu0 0.0
    %212 = vmatpush1.msra.mxu0 %v68
    %213 = vmatprep.subr.mxu0 0.0
    %214 = vmatpush1.msra.mxu0 %v69
    %215 = vmatprep.subr.mxu0 0.0
    %216 = vmatpush1.msra.mxu0 %v70
    %217 = vmatprep.subr.mxu0 0.0
    %218 = vmatpush1.msra.mxu0 %v71
    %219 = vmatprep.subr.mxu0 0.0
    %220 = vmatpush1.msra.mxu0 %v72
    %221 = vmatprep.subr.mxu0 0.0
    %222 = vmatpush1.msra.mxu0 %v73
    %223 = vmatprep.subr.mxu0 0.0
    %224 = vmatpush1.msra.mxu0 %v74
    %225 = vmatprep.subr.mxu0 0.0
    %226 = vmatpush1.msra.mxu0 %v75
    %227 = vmatprep.subr.mxu0 0.0
    %228 = vmatpush1.msra.mxu0 %v76
    %229 = vmatprep.subr.mxu0 0.0
    %230 = vmatpush1.msra.mxu0 %v77
    %231 = vmatprep.subr.mxu0 0.0
    %232 = vmatpush1.msra.mxu0 %v78
    %233 = vmatprep.subr.mxu0 0.0
    %234 = vmatpush1.msra.mxu0 %v79
    %235 = vmatprep.subr.mxu0 0.0
    %236 = vmatpush1.msra.mxu0 %v80
    %237 = vmatprep.subr.mxu0 0.0
    %238 = vmatpush1.msra.mxu0 %v81
    %239 = vmatprep.subr.mxu0 0.0
    %240 = vmatpush1.msra.mxu0 %v82
    %241 = vmatprep.subr.mxu0 0.0
    %242 = vmatpush1.msra.mxu0 %v83
    %243 = vmatprep.subr.mxu0 0.0
    %244 = vmatpush1.msra.mxu0 %v84
    %245 = vmatprep.subr.mxu0 0.0
    %246 = vmatpush1.msra.mxu0 %v85
    %247 = vmatprep.subr.mxu0 0.0
    %248 = vmatpush1.msra.mxu0 %v86
    %249 = vmatprep.subr.mxu0 0.0
    %250 = vmatpush1.msra.mxu0 %v87
    %251 = vmatprep.subr.mxu0 0.0
    %252 = vmatpush1.msra.mxu0 %v88
    %253 = vmatprep.subr.mxu0 0.0
    %254 = vmatpush1.msra.mxu0 %v89
    %255 = vmatprep.subr.mxu0 0.0
    %256 = vmatpush1.msra.mxu0 %v90
    %257 = vmatprep.subr.mxu0 0.0
    %258 = vmatpush1.msra.mxu0 %v91
    %259 = vmatprep.subr.mxu0 0.0
    %260 = vmatpush1.msra.mxu0 %v92
    %261 = vmatprep.subr.mxu0 0.0
    %262 = vmatpush1.msra.mxu0 %v93
    %263 = vmatprep.subr.mxu0 0.0
    %264 = vmatpush1.msra.mxu0 %v94
    %265 = vmatprep.subr.mxu0 0.0
    %266 = vmatpush1.msra.mxu0 %v95
    %267 = vmatprep.mubr.f32.mxu0 %v57
    %268 = vmatmul.mubr.f32.gmra.mrb[0].mxu0 %v56
    %v269 = vpop.f32.mrb[0].mxu0
    %v270 = vadd.f32 %v201, %v269
    %v271 = vpop.f32.mrb[0].mxu0
    %272 = vdwg.mxu0
    %273 = vmatprep.subr.mxu0 0.0
    %274 = vmatpush1.msra.mxu0 %v96
    %275 = vmatprep.subr.mxu0 0.0
    %276 = vmatpush1.msra.mxu0 %v97
    %277 = vmatprep.subr.mxu0 0.0
    %278 = vmatpush1.msra.mxu0 %v98
    %279 = vmatprep.subr.mxu0 0.0
    %280 = vmatpush1.msra.mxu0 %v99
    %281 = vmatprep.subr.mxu0 0.0
    %282 = vmatpush1.msra.mxu0 %v100
    %283 = vmatprep.subr.mxu0 0.0
    %284 = vmatpush1.msra.mxu0 %v101
    %285 = vmatprep.subr.mxu0 0.0
    %286 = vmatpush1.msra.mxu0 %v102
    %287 = vmatprep.subr.mxu0 0.0
    %288 = vmatpush1.msra.mxu0 %v103
    %289 = vmatprep.subr.mxu0 0.0
    %290 = vmatpush1.msra.mxu0 %v104
    %291 = vmatprep.subr.mxu0 0.0
    %292 = vmatpush1.msra.mxu0 %v105
    %293 = vmatprep.subr.mxu0 0.0
    %294 = vmatpush1.msra.mxu0 %v106
    %295 = vmatprep.subr.mxu0 0.0
    %296 = vmatpush1.msra.mxu0 %v107
    %297 = vmatprep.subr.mxu0 0.0
    %298 = vmatpush1.msra.mxu0 %v108
    %299 = vmatprep.subr.mxu0 0.0
    %300 = vmatpush1.msra.mxu0 %v109
    %301 = vmatprep.subr.mxu0 0.0
    %302 = vmatpush1.msra.mxu0 %v110
    %303 = vmatprep.subr.mxu0 0.0
    %304 = vmatpush1.msra.mxu0 %v111
    %305 = vmatprep.subr.mxu0 0.0
    %306 = vmatpush1.msra.mxu0 %v112
    %307 = vmatprep.subr.mxu0 0.0
    %308 = vmatpush1.msra.mxu0 %v113
    %309 = vmatprep.subr.mxu0 0.0
    %310 = vmatpush1.msra.mxu0 %v114
    %311 = vmatprep.subr.mxu0 0.0
    %312 = vmatpush1.msra.mxu0 %v115
    %313 = vmatprep.subr.mxu0 0.0
    %314 = vmatpush1.msra.mxu0 %v116
    %315 = vmatprep.subr.mxu0 0.0
    %316 = vmatpush1.msra.mxu0 %v117
    %317 = vmatprep.subr.mxu0 0.0
    %318 = vmatpush1.msra.mxu0 %v118
    %319 = vmatprep.subr.mxu0 0.0
    %320 = vmatpush1.msra.mxu0 %v119
    %321 = vmatprep.subr.mxu0 0.0
    %322 = vmatpush1.msra.mxu0 %v120
    %323 = vmatprep.subr.mxu0 0.0
    %324 = vmatpush1.msra.mxu0 %v121
    %325 = vmatprep.subr.mxu0 0.0
    %326 = vmatpush1.msra.mxu0 %v122
    %327 = vmatprep.subr.mxu0 0.0
    %328 = vmatpush1.msra.mxu0 %v123
    %329 = vmatprep.subr.mxu0 0.0
    %330 = vmatpush1.msra.mxu0 %v124
    %331 = vmatprep.subr.mxu0 0.0
    %332 = vmatpush1.msra.mxu0 %v125
    %333 = vmatprep.subr.mxu0 0.0
    %334 = vmatpush1.msra.mxu0 %v126
    %335 = vmatprep.subr.mxu0 0.0
    %336 = vmatpush1.msra.mxu0 %v127
    %337 = vmatprep.mubr.f32.mxu0 %v59
    %338 = vmatmul.mubr.f32.gmra.mrb[0].mxu0 %v58
    %v339 = vpop.f32.mrb[0].mxu0
    %v340 = vadd.f32 %v270, %v339
    %v341 = vpop.f32.mrb[0].mxu0
    %342 = vdwg.mxu0
    %343 = vmatprep.subr.mxu0 0.0
    %344 = vmatpush1.msra.mxu0 %v128
    %345 = vmatprep.subr.mxu0 0.0
    %346 = vmatpush1.msra.mxu0 %v129
    %347 = vmatprep.subr.mxu0 0.0
    %348 = vmatpush1.msra.mxu0 %v130
    %349 = vmatprep.subr.mxu0 0.0
    %350 = vmatpush1.msra.mxu0 %v131
    %351 = vmatprep.subr.mxu0 0.0
    %352 = vmatpush1.msra.mxu0 %v132
    %353 = vmatprep.subr.mxu0 0.0
    %354 = vmatpush1.msra.mxu0 %v133
    %355 = vmatprep.subr.mxu0 0.0
    %356 = vmatpush1.msra.mxu0 %v134
    %357 = vmatprep.subr.mxu0 0.0
    %358 = vmatpush1.msra.mxu0 %v135
    %359 = vmatprep.subr.mxu0 0.0
    %360 = vmatpush1.msra.mxu0 %v136
    %361 = vmatprep.subr.mxu0 0.0
    %362 = vmatpush1.msra.mxu0 %v137
    %363 = vmatprep.subr.mxu0 0.0
    %364 = vmatpush1.msra.mxu0 %v138
    %365 = vmatprep.subr.mxu0 0.0
    %366 = vmatpush1.msra.mxu0 %v139
    %367 = vmatprep.subr.mxu0 0.0
    %368 = vmatpush1.msra.mxu0 %v140
    %369 = vmatprep.subr.mxu0 0.0
    %370 = vmatpush1.msra.mxu0 %v141
    %371 = vmatprep.subr.mxu0 0.0
    %372 = vmatpush1.msra.mxu0 %v142
    %373 = vmatprep.subr.mxu0 0.0
    %374 = vmatpush1.msra.mxu0 %v143
    %375 = vmatprep.subr.mxu0 0.0
    %376 = vmatpush1.msra.mxu0 %v144
    %377 = vmatprep.subr.mxu0 0.0
    %378 = vmatpush1.msra.mxu0 %v145
    %379 = vmatprep.subr.mxu0 0.0
    %380 = vmatpush1.msra.mxu0 %v146
    %381 = vmatprep.subr.mxu0 0.0
    %382 = vmatpush1.msra.mxu0 %v147
    %383 = vmatprep.subr.mxu0 0.0
    %384 = vmatpush1.msra.mxu0 %v148
    %385 = vmatprep.subr.mxu0 0.0
    %386 = vmatpush1.msra.mxu0 %v149
    %387 = vmatprep.subr.mxu0 0.0
    %388 = vmatpush1.msra.mxu0 %v150
    %389 = vmatprep.subr.mxu0 0.0
    %390 = vmatpush1.msra.mxu0 %v151
    %391 = vmatprep.subr.mxu0 0.0
    %392 = vmatpush1.msra.mxu0 %v152
    %393 = vmatprep.subr.mxu0 0.0
    %394 = vmatpush1.msra.mxu0 %v153
    %395 = vmatprep.subr.mxu0 0.0
    %396 = vmatpush1.msra.mxu0 %v154
    %397 = vmatprep.subr.mxu0 0.0
    %398 = vmatpush1.msra.mxu0 %v155
    %399 = vmatprep.subr.mxu0 0.0
    %400 = vmatpush1.msra.mxu0 %v156
    %401 = vmatprep.subr.mxu0 0.0
    %402 = vmatpush1.msra.mxu0 %v157
    %403 = vmatprep.subr.mxu0 0.0
    %404 = vmatpush1.msra.mxu0 %v158
    %405 = vmatprep.subr.mxu0 0.0
    %406 = vmatpush1.msra.mxu0 %v159
    %407 = vmatprep.mubr.f32.mxu0 %v61
    %408 = vmatmul.mubr.f32.gmra.mrb[0].mxu0 %v60
    %v409 = vpop.f32.mrb[0].mxu0
    %v410 = vadd.f32 %v340, %v409
    %v411 = vpop.f32.mrb[0].mxu0
    %412 = vdwg.mxu0
    %413 = vmatprep.subr.mxu0 0.0
    %414 = vmatpush1.msra.mxu0 %v160
    %415 = vmatprep.subr.mxu0 0.0
    %416 = vmatpush1.msra.mxu0 %v161
    %417 = vmatprep.subr.mxu0 0.0
    %418 = vmatpush1.msra.mxu0 %v162
    %419 = vmatprep.subr.mxu0 0.0
    %420 = vmatpush1.msra.mxu0 %v163
    %421 = vmatprep.subr.mxu0 0.0
    %422 = vmatpush1.msra.mxu0 %v164
    %423 = vmatprep.subr.mxu0 0.0
    %424 = vmatpush1.msra.mxu0 %v165
    %425 = vmatprep.subr.mxu0 0.0
    %426 = vmatpush1.msra.mxu0 %v166
    %427 = vmatprep.subr.mxu0 0.0
    %428 = vmatpush1.msra.mxu0 %v167
    %429 = vmatprep.subr.mxu0 0.0
    %430 = vmatpush1.msra.mxu0 %v168
    %431 = vmatprep.subr.mxu0 0.0
    %432 = vmatpush1.msra.mxu0 %v169
    %433 = vmatprep.subr.mxu0 0.0
    %434 = vmatpush1.msra.mxu0 %v170
    %435 = vmatprep.subr.mxu0 0.0
    %436 = vmatpush1.msra.mxu0 %v171
    %437 = vmatprep.subr.mxu0 0.0
    %438 = vmatpush1.msra.mxu0 %v172
    %439 = vmatprep.subr.mxu0 0.0
    %440 = vmatpush1.msra.mxu0 %v173
    %441 = vmatprep.subr.mxu0 0.0
    %442 = vmatpush1.msra.mxu0 %v174
    %443 = vmatprep.subr.mxu0 0.0
    %444 = vmatpush1.msra.mxu0 %v175
    %445 = vmatprep.subr.mxu0 0.0
    %446 = vmatpush1.msra.mxu0 %v176
    %447 = vmatprep.subr.mxu0 0.0
    %448 = vmatpush1.msra.mxu0 %v177
    %449 = vmatprep.subr.mxu0 0.0
    %450 = vmatpush1.msra.mxu0 %v178
    %451 = vmatprep.subr.mxu0 0.0
    %452 = vmatpush1.msra.mxu0 %v179
    %453 = vmatprep.subr.mxu0 0.0
    %454 = vmatpush1.msra.mxu0 %v180
    %455 = vmatprep.subr.mxu0 0.0
    %456 = vmatpush1.msra.mxu0 %v181
    %457 = vmatprep.subr.mxu0 0.0
    %458 = vmatpush1.msra.mxu0 %v182
    %459 = vmatprep.subr.mxu0 0.0
    %460 = vmatpush1.msra.mxu0 %v183
    %461 = vmatprep.subr.mxu0 0.0
    %462 = vmatpush1.msra.mxu0 %v184
    %463 = vmatprep.subr.mxu0 0.0
    %464 = vmatpush1.msra.mxu0 %v185
    %465 = vmatprep.subr.mxu0 0.0
    %466 = vmatpush1.msra.mxu0 %v186
    %467 = vmatprep.subr.mxu0 0.0
    %468 = vmatpush1.msra.mxu0 %v187
    %469 = vmatprep.subr.mxu0 0.0
    %470 = vmatpush1.msra.mxu0 %v188
    %471 = vmatprep.subr.mxu0 0.0
    %472 = vmatpush1.msra.mxu0 %v189
    %473 = vmatprep.subr.mxu0 0.0
    %474 = vmatpush1.msra.mxu0 %v190
    %475 = vmatprep.subr.mxu0 0.0
    %476 = vmatpush1.msra.mxu0 %v191
    %477 = vmatprep.mubr.f32.mxu0 %v63
    %478 = vmatmul.mubr.f32.gmra.mrb[0].mxu0 %v62
    %v479 = vpop.f32.mrb[0].mxu0
    %v480 = vadd.f32 %v410, %v479
    %v481 = vpop.f32.mrb[0].mxu0
    %482 = vdwg.mxu0
    %v483 = vstv %s195
    %v484 = vmul.f32 %v480, %v483
    %485 = vst [vmem:[#allocation9] sm:$0xff] %v484
    // Predicated region
    $region30: #{forward.1} parent=1 // pred_check
      _
    $region31: #{forward.1} parent=1 // pred_check_branch
      %487 = sbr.rel (0) target = $region33
    $region32: #{forward.1} parent=1 // pred_region
      %s489 = ssub.s32 128, 128
      %490 = vsyncadd [#allocation5], %s489
      %s492 = sshll.u32 [#allocation9], 4
      %s493 = int_to_ptr.vmem [resolvable:$true] %s492
      %495 = dma.vmem_to_hbm [thread:$0]  %s493, 128, %s4, [#allocation5]
    $region33: #{forward.1} parent=1 // pred_fallthru
      _
    // Predicated region
    $region34: #{forward.1} parent=1 // pred_check
      _
    $region35: #{forward.1} parent=1 // pred_check_branch
      %497 = sbr.rel (0) target = $region37
    $region36: #{forward.1} parent=1 // pred_region
      %498 = dma.done [#allocation5], 128
    $region37: #{forward.1} parent=1 // pred_fallthru
      _
    %499 = vsyncpa [#allocation4], 1
    %500 = vsyncpa [#allocation7], 1
    %501 = vsyncpa [#allocation5], 1

</llo_original>
